<compile_context>
chip_gen: v7x
topology: tpu7x:2x2x1
jax: 0.10.0
libtpu: 0.0.40
codegen_flags: <defaults>
</compile_context>

<pallas_src>
import numpy as np
import jax
import jax.numpy as jnp
from jax import lax
from jax.experimental import pallas as pl
from jax.experimental.pallas import tpu as pltpu


def fold_bn(gamma, beta, mean, var, eps=1e-5):
    scale = (gamma / jnp.sqrt(var + eps)).astype(jnp.float32)          # (C,)
    bias = (beta - mean * scale).reshape(-1, 1).astype(jnp.float32)    # (C, 1)
    return scale, bias


def _vmem_capacity_bytes():
    try:
        return int(pltpu.get_tpu_info().vmem_capacity_bytes)
    except Exception:
        return 64 * 2 ** 20        # conservative fallback (v7x per-TC VMEM)


def _make_kernel(*, K, S, P, T, T2, L1, B_tile, pack1, pack2, compute_dtype):
    rm, qm = P % S, P // S

    def kernel(ph_ref, w1_ref, w2_ref, wm_ref, b1_ref, b2_ref, bm_ref, out_ref):
        # ph_ref : (B_tile, S, Cin, Lph_t)   phase-split input tile (incl. conv2 halo)
        # w1_ref : (Cout, K*Cin) or (K, Cout, Cin)    conv1 weight, BN1 scale folded
        # w2_ref : (Cout, K*Cout) or (K, Cout, Cout)  conv2 weight, BN2 scale folded
        # wm_ref : (Cout, Cin)               1x1 mapping weight, BNm scale folded
        # b*_ref : (Cout, 1) f32             folded BN biases
        # out_ref: (B_tile, Cout, T)         NCL output tile
        t = pl.program_id(1)

        # conv1-output columns computed in this tile: global position = t*T - P + i.
        # conv2 zero-pads conv1's OUTPUT, so columns outside [0, L1) must be zeroed.
        lane = lax.broadcasted_iota(jnp.int32, (1, T2), 1)
        g = t * T - P + lane
        valid = jnp.logical_and(g >= 0, g < L1)

        b1v = b1_ref[...]
        b2v = b2_ref[...]
        bmv = bm_ref[...]
        wmv = wm_ref[...]

        for b in range(B_tile):
            # ---- conv1 (stride S): K shifted matmuls on the phase-split input ----
            if pack1:
                rhs1 = jnp.concatenate(
                    [ph_ref[b, k % S, :, (k // S):(k // S) + T2] for k in range(K)],
                    axis=0)                                        # (K*Cin, T2)
                acc1 = jnp.dot(w1_ref[...], rhs1,
                               preferred_element_type=jnp.float32)
            else:
                acc1 = jnp.dot(w1_ref[0], ph_ref[b, 0, :, 0:T2],
                               preferred_element_type=jnp.float32)
                for k in range(1, K):
                    r, q = k % S, k // S
                    acc1 = acc1 + jnp.dot(w1_ref[k], ph_ref[b, r, :, q:q + T2],
                                          preferred_element_type=jnp.float32)
            y1 = jnp.maximum(acc1 + b1v, 0.0)                      # BN1 bias + ReLU
            y1 = jnp.where(valid, y1, 0.0).astype(compute_dtype)   # zero outside [0, L1)

            # ---- conv2 ('same', stride 1): K shifted matmuls on y1 (in-register) ----
            if pack2:
                rhs2 = jnp.concatenate([y1[:, k:k + T] for k in range(K)], axis=0)
                acc2 = jnp.dot(w2_ref[...], rhs2,
                               preferred_element_type=jnp.float32)
            else:
                acc2 = jnp.dot(w2_ref[0], y1[:, 0:T],
                               preferred_element_type=jnp.float32)
                for k in range(1, K):
                    acc2 = acc2 + jnp.dot(w2_ref[k], y1[:, k:k + T],
                                          preferred_element_type=jnp.float32)
            y2 = acc2 + b2v

            # ---- identity / downsample: 1x1 stride-S conv + BNm bias ----
            ym = jnp.dot(wmv, ph_ref[b, rm, :, qm + P:qm + P + T],
                         preferred_element_type=jnp.float32) + bmv

            out_ref[b, :, :] = jnp.maximum(y2 + ym, 0.0).astype(out_ref.dtype)

    return kernel


def resnet_block_basic(x_ncl, w1, w2, wm, bn1, bn2, bnm, *, stride, kernel_size,
                       compute_dtype=jnp.bfloat16, out_dtype=None, eps=1e-5,
                       max_rows_per_tile=512):
    N, Cin, L = x_ncl.shape
    Cout = w1.shape[0]
    K, S = kernel_size, stride
    assert K % 2 == 1, "even kernel_size breaks 'same'/identity length matching"
    if out_dtype is None:
        out_dtype = compute_dtype

    P = K // 2
    qmax = (K - 1) // S
    L1 = (L + 2 * P - K) // S + 1            # block output length

    # ---- L1 tiling: bounds per-step VMEM, more grid steps to pipeline / shard ----
    if L1 <= max_rows_per_tile:
        T, n_lt = L1, 1
    else:
        T = max(128, (max_rows_per_tile // 128) * 128)   # out block last dim: x128
        n_lt = pl.cdiv(L1, T)
    T2 = T + 2 * P                            # conv1 columns computed per tile (halo)
    Lph_t = T2 + qmax                         # phase columns needed per tile

    # ---- batch blocking: several batch elems per grid step when L1 is small ----
    max_bt = max(1, min(8, 1024 // max(T, 8)))
    B_tile = 1
    for d in range(1, min(N, max_bt) + 1):
        if N % d == 0:
            B_tile = d
    n_nt = N // B_tile
    # TODO(synk): fold B_tile*T into a single matmul M dimension for better MXU
    #             fill at tiny L1 (currently an unrolled per-batch loop).

    # ---- input prep directly in compute_dtype (single pass, no layout transpose) ----
    xc = x_ncl.astype(compute_dtype)                              # (N, Cin, L)
    xp = jnp.pad(xc, ((0, 0), (0, 0), (P, P)))                    # (N, Cin, L+2P)
    need = n_lt * T + P + qmax
    phs = []
    for r in range(S):
        ph = xp[:, :, r::S]
        cur = ph.shape[2]
        ph = ph[:, :, :need] if cur >= need else jnp.pad(
            ph, ((0, 0), (0, 0), (0, need - cur)))
        phs.append(ph)
    phases = jnp.stack(phs, axis=1)                               # (N, S, Cin, need)
    phases = jnp.pad(phases, ((0, 0), (0, 0), (0, 0), (P, 0)))    # left conv2 halo
    if n_lt == 1:
        tiles = phases[:, None]                                   # (N, 1, S, Cin, Lph_t)
    else:
        tiles = jnp.stack([phases[..., t * T:t * T + Lph_t] for t in range(n_lt)],
                          axis=1)                                  # overlapping halo tiles
    tiles = tiles.reshape(N, n_lt * S, Cin, Lph_t)

    # ---- fold BN scales into conv weights; biases stay f32 ----
    s1, b1 = fold_bn(*bn1, eps)
    s2, b2 = fold_bn(*bn2, eps)
    sm, bm = fold_bn(*bnm, eps)

    bp = jnp.dtype(compute_dtype).itemsize
    sub_mult = 8 * (4 // bp)                  # sublane multiple for aligned concat
    pack1 = (K > 1) and (Cin <= 128) and (Cin % sub_mult == 0)
    pack2 = (K > 1) and (Cout <= 128) and (Cout % sub_mult == 0)
    if pack1:
        w1k = (jnp.transpose(w1, (0, 2, 1)) * s1[:, None, None]).reshape(Cout, K * Cin)
        w1_spec = pl.BlockSpec((Cout, K * Cin), lambda n, t: (0, 0))
    else:
        w1k = jnp.transpose(w1, (2, 0, 1)) * s1[None, :, None]    # (K, Cout, Cin)
        w1_spec = pl.BlockSpec((K, Cout, Cin), lambda n, t: (0, 0, 0))
    if pack2:
        w2k = (jnp.transpose(w2, (0, 2, 1)) * s2[:, None, None]).reshape(Cout, K * Cout)
        w2_spec = pl.BlockSpec((Cout, K * Cout), lambda n, t: (0, 0))
    else:
        w2k = jnp.transpose(w2, (2, 0, 1)) * s2[None, :, None]    # (K, Cout, Cout)
        w2_spec = pl.BlockSpec((K, Cout, Cout), lambda n, t: (0, 0, 0))
    wmk = wm[:, :, 0] * sm[:, None]                               # (Cout, Cin)
    w1k = w1k.astype(compute_dtype)
    w2k = w2k.astype(compute_dtype)
    wmk = wmk.astype(compute_dtype)
    # TODO(synk): mark the constant-index weight/bias specs single-buffered
    #             (pipeline_mode=pl.Buffered(1)) once validated on the target jax rev.

    # ---- VMEM budget derived from the actual chip (v7x: 64 MiB/TC) ----
    obp = jnp.dtype(out_dtype).itemsize
    est = (2 * B_tile * (S * Cin * Lph_t * bp + Cout * T * obp)            # act i/o (x2 buf)
           + 2 * ((K * Cin + K * Cout + Cin) * Cout * bp + 3 * Cout * 4)   # weights + biases
           + Cout * T2 * 4 + K * (Cin * T2 + Cout * T) * bp + 2 * Cout * T * 4)  # temps
    vmem_limit = int(min(int(0.75 * _vmem_capacity_bytes()),
                         max(8 * 2 ** 20, 2 * est)))

    flops = 2 * N * L1 * Cout * (K * Cin + K * Cout + Cin)
    bytes_accessed = int(tiles.size * bp + (w1k.size + w2k.size + wmk.size) * bp
                         + 3 * Cout * 4 + N * Cout * L1 * obp)

    out = pl.pallas_call(
        _make_kernel(K=K, S=S, P=P, T=T, T2=T2, L1=L1, B_tile=B_tile,
                     pack1=pack1, pack2=pack2, compute_dtype=compute_dtype),
        out_shape=jax.ShapeDtypeStruct((N, Cout, L1), out_dtype),
        grid=(n_nt, n_lt),
        in_specs=[
            pl.BlockSpec((B_tile, S, Cin, Lph_t), lambda n, t: (n, t, 0, 0)),
            w1_spec,
            w2_spec,
            pl.BlockSpec((Cout, Cin), lambda n, t: (0, 0)),
            pl.BlockSpec((Cout, 1), lambda n, t: (0, 0)),
            pl.BlockSpec((Cout, 1), lambda n, t: (0, 0)),
            pl.BlockSpec((Cout, 1), lambda n, t: (0, 0)),
        ],
        out_specs=pl.BlockSpec((B_tile, Cout, T), lambda n, t: (n, 0, t)),
        compiler_params=pltpu.CompilerParams(
            dimension_semantics=("parallel", "parallel"),
            vmem_limit_bytes=vmem_limit),
        cost_estimate=pl.CostEstimate(flops=flops, transcendentals=0,
                                      bytes_accessed=bytes_accessed),
    )(tiles, w1k, w2k, wmk, b1, b2, bm)
    return out                                # (N, Cout, L1) NCL — no post-transpose


def ref_forward(x, w1, w2, wm, bn1, bn2, bnm, *, stride, kernel_size, eps=1e-5):
    """Pure-JAX reference with eval-mode BatchNorm semantics."""
    def conv1d(a, w, s, p):
        return lax.conv_general_dilated(a, w, window_strides=(s,),
                                        padding=[(p, p)],
                                        dimension_numbers=("NCH", "OIH", "NCH"))

    def bn(a, params):
        g, b, m, v = params
        return ((a - m[None, :, None]) / jnp.sqrt(v[None, :, None] + eps)
                * g[None, :, None] + b[None, :, None])

    K, S = kernel_size, stride
    y = jax.nn.relu(bn(conv1d(x, w1, S, K // 2), bn1))
    y = bn(conv1d(y, w2, 1, K // 2), bn2)
    iden = bn(conv1d(x, wm, S, 0), bnm)
    return jax.nn.relu(y + iden)


def _bn_params(k, c):
    k1, k2, k3, k4 = jax.random.split(k, 4)
    gamma = 1.0 + 0.1 * jax.random.normal(k1, (c,), jnp.float32)
    beta = 0.1 * jax.random.normal(k2, (c,), jnp.float32)
    mean = 0.1 * jax.random.normal(k3, (c,), jnp.float32)
    var = 1.0 + 0.1 * jax.random.uniform(k4, (c,), jnp.float32)
    return gamma, beta, mean, var


def _run_case(key, N, Cin, Cout, L, K, S, check_bf16=True, max_rows_per_tile=512):
    ks = jax.random.split(key, 8)
    x = jax.random.normal(ks[0], (N, Cin, L), jnp.float32)
    w1 = 0.3 * jax.random.normal(ks[1], (Cout, Cin, K), jnp.float32)
    w2 = 0.3 * jax.random.normal(ks[2], (Cout, Cout, K), jnp.float32)
    wm = 0.3 * jax.random.normal(ks[3], (Cout, Cin, 1), jnp.float32)
    bn1 = _bn_params(ks[4], Cout)
    bn2 = _bn_params(ks[5], Cout)
    bnm = _bn_params(ks[6], Cout)

    ref = ref_forward(x, w1, w2, wm, bn1, bn2, bnm, stride=S, kernel_size=K)
    L1 = (L + 2 * (K // 2) - K) // S + 1

    # f32 path (f32 output): tight check
    out_f32 = jax.block_until_ready(
        resnet_block_basic(x, w1, w2, wm, bn1, bn2, bnm, stride=S, kernel_size=K,
                           compute_dtype=jnp.float32,
                           max_rows_per_tile=max_rows_per_tile))
    assert out_f32.shape == (N, Cout, L1), out_f32.shape
    np.testing.assert_allclose(np.asarray(out_f32), np.asarray(ref),
                               rtol=2e-4, atol=2e-4)

    if check_bf16:
        # bf16 path (MXU-native on v6e/v7x) with bf16 output: looser check
        out_bf16 = jax.block_until_ready(
            resnet_block_basic(x, w1, w2, wm, bn1, bn2, bnm, stride=S, kernel_size=K,
                               compute_dtype=jnp.bfloat16,
                               max_rows_per_tile=max_rows_per_tile))
        assert out_bf16.dtype == jnp.bfloat16
        np.testing.assert_allclose(np.asarray(out_bf16.astype(jnp.float32)),
                                   np.asarray(ref), rtol=4e-2, atol=4e-2)


if __name__ == "__main__":
    key = jax.random.PRNGKey(0)
    k1, k2, k3, k4 = jax.random.split(key, 4)
    # strided downsampling block (single L-tile)
    _run_case(k1, N=2, Cin=4, Cout=8, L=16, K=3, S=2, check_bf16=True)
    # stride-1 block, same channel count (single L-tile)
    _run_case(k2, N=2, Cin=8, Cout=8, L=16, K=3, S=1, check_bf16=True)
    # longer sequence exercising the L1-tile grid axis + tap packing
    _run_case(k3, N=2, Cin=8, Cout=16, L=512, K=3, S=1, check_bf16=False,
              max_rows_per_tile=128)
    # strided + L1-tiled (multi-phase, multi-tile)
    _run_case(k4, N=2, Cin=4, Cout=8, L=1024, K=3, S=2, check_bf16=False,
              max_rows_per_tile=128)
    print("KERNEL_OK")
</pallas_src>

<mosaic_0001>
module attributes {stable_mosaic.version = 11 : i64} {
  func.func @kernel(%arg0: i32, %arg1: i32, %arg2: memref<2x2x4x11xf32, #tpu.memory_space<vmem>>, %arg3: memref<3x8x4xf32, #tpu.memory_space<vmem>>, %arg4: memref<8x24xf32, #tpu.memory_space<vmem>>, %arg5: memref<8x4xf32, #tpu.memory_space<vmem>>, %arg6: memref<8x1xf32, #tpu.memory_space<vmem>>, %arg7: memref<8x1xf32, #tpu.memory_space<vmem>>, %arg8: memref<8x1xf32, #tpu.memory_space<vmem>>, %arg9: memref<2x8x8xf32, #tpu.memory_space<vmem>>) attributes {dimension_semantics = [#tpu.dimension_semantics<parallel>, #tpu.dimension_semantics<parallel>], iteration_bounds = array<i64: 1, 1>, scalar_prefetch = 0 : i64, scratch_operands = 0 : i64, tpu.core_type = #tpu.core_type<tc>, window_params = [{transform_indices = @transform_0, window_bounds = array<i64: 2, 2, 4, 11>}, {pipeline_mode = #tpu.pipeline_mode<synchronous>, transform_indices = @transform_1, window_bounds = array<i64: 3, 8, 4>}, {pipeline_mode = #tpu.pipeline_mode<synchronous>, transform_indices = @transform_2, window_bounds = array<i64: 8, 24>}, {pipeline_mode = #tpu.pipeline_mode<synchronous>, transform_indices = @transform_3, window_bounds = array<i64: 8, 4>}, {pipeline_mode = #tpu.pipeline_mode<synchronous>, transform_indices = @transform_4, window_bounds = array<i64: 8, 1>}, {pipeline_mode = #tpu.pipeline_mode<synchronous>, transform_indices = @transform_5, window_bounds = array<i64: 8, 1>}, {pipeline_mode = #tpu.pipeline_mode<synchronous>, transform_indices = @transform_6, window_bounds = array<i64: 8, 1>}, {transform_indices = @transform_7, window_bounds = array<i64: 2, 8, 8>}]} {
    %0 = tpu.iota {dimensions = array<i32: 1>} : vector<1x10xi32>
    %c8_i32 = arith.constant 8 : i32
    %1 = arith.muli %arg1, %c8_i32 : i32
    %c1_i32 = arith.constant 1 : i32
    %2 = arith.subi %1, %c1_i32 : i32
    %3 = vector.broadcast %2 : i32 to vector<1x10xi32>
    %4 = arith.addi %3, %0 : vector<1x10xi32>
    %c0_i32 = arith.constant 0 : i32
    %5 = vector.broadcast %c0_i32 : i32 to vector<1x10xi32>
    %6 = arith.cmpi sge, %4, %5 : vector<1x10xi32>
    %c8_i32_0 = arith.constant 8 : i32
    %7 = vector.broadcast %c8_i32_0 : i32 to vector<1x10xi32>
    %8 = arith.cmpi slt, %4, %7 : vector<1x10xi32>
    %9 = arith.andi %6, %8 : vector<1x10xi1>
    %c0 = arith.constant 0 : index
    %c0_1 = arith.constant 0 : index
    %10 = vector.load %arg6[%c0, %c0_1] : memref<8x1xf32, #tpu.memory_space<vmem>>, vector<8x1xf32>
    %c0_2 = arith.constant 0 : index
    %c0_3 = arith.constant 0 : index
    %11 = vector.load %arg7[%c0_2, %c0_3] : memref<8x1xf32, #tpu.memory_space<vmem>>, vector<8x1xf32>
    %c0_4 = arith.constant 0 : index
    %c0_5 = arith.constant 0 : index
    %12 = vector.load %arg8[%c0_4, %c0_5] : memref<8x1xf32, #tpu.memory_space<vmem>>, vector<8x1xf32>
    %c0_6 = arith.constant 0 : index
    %c0_7 = arith.constant 0 : index
    %13 = vector.load %arg5[%c0_6, %c0_7] : memref<8x4xf32, #tpu.memory_space<vmem>>, vector<8x4xf32>
    %c0_8 = arith.constant 0 : index
    %c0_9 = arith.constant 0 : index
    %c0_10 = arith.constant 0 : index
    %14 = vector.load %arg3[%c0_8, %c0_9, %c0_10] : memref<3x8x4xf32, #tpu.memory_space<vmem>>, vector<1x8x4xf32>
    %15 = vector.shape_cast %14 : vector<1x8x4xf32> to vector<8x4xf32>
    %c0_11 = arith.constant 0 : index
    %c0_12 = arith.constant 0 : index
    %c0_13 = arith.constant 0 : index
    %c0_14 = arith.constant 0 : index
    %16 = vector.load %arg2[%c0_11, %c0_12, %c0_13, %c0_14] : memref<2x2x4x11xf32, #tpu.memory_space<vmem>>, vector<1x1x4x10xf32>
    %17 = vector.shape_cast %16 : vector<1x1x4x10xf32> to vector<4x10xf32>
    %cst = arith.constant dense<0.000000e+00> : vector<8x10xf32>
    %18 = tpu.matmul %15, %17, %cst {dimension_numbers = #tpu.dot_dimension_numbers<[1], [0], [0], [1], [0, 0, 1, 1], [], []>} : vector<8x4xf32>, vector<4x10xf32>, vector<8x10xf32> -> vector<8x10xf32>
    %c1 = arith.constant 1 : index
    %c0_15 = arith.constant 0 : index
    %c0_16 = arith.constant 0 : index
    %19 = vector.load %arg3[%c1, %c0_15, %c0_16] : memref<3x8x4xf32, #tpu.memory_space<vmem>>, vector<1x8x4xf32>
    %20 = vector.shape_cast %19 : vector<1x8x4xf32> to vector<8x4xf32>
    %c0_17 = arith.constant 0 : index
    %c1_18 = arith.constant 1 : index
    %c0_19 = arith.constant 0 : index
    %c0_20 = arith.constant 0 : index
    %21 = vector.load %arg2[%c0_17, %c1_18, %c0_19, %c0_20] : memref<2x2x4x11xf32, #tpu.memory_space<vmem>>, vector<1x1x4x10xf32>
    %22 = vector.shape_cast %21 : vector<1x1x4x10xf32> to vector<4x10xf32>
    %cst_21 = arith.constant dense<0.000000e+00> : vector<8x10xf32>
    %23 = tpu.matmul %20, %22, %cst_21 {dimension_numbers = #tpu.dot_dimension_numbers<[1], [0], [0], [1], [0, 0, 1, 1], [], []>} : vector<8x4xf32>, vector<4x10xf32>, vector<8x10xf32> -> vector<8x10xf32>
    %24 = arith.addf %18, %23 : vector<8x10xf32>
    %c2 = arith.constant 2 : index
    %c0_22 = arith.constant 0 : index
    %c0_23 = arith.constant 0 : index
    %25 = vector.load %arg3[%c2, %c0_22, %c0_23] : memref<3x8x4xf32, #tpu.memory_space<vmem>>, vector<1x8x4xf32>
    %26 = vector.shape_cast %25 : vector<1x8x4xf32> to vector<8x4xf32>
    %c0_24 = arith.constant 0 : index
    %c0_25 = arith.constant 0 : index
    %c0_26 = arith.constant 0 : index
    %c1_27 = arith.constant 1 : index
    %27 = vector.load %arg2[%c0_24, %c0_25, %c0_26, %c1_27] : memref<2x2x4x11xf32, #tpu.memory_space<vmem>>, vector<1x1x4x10xf32>
    %28 = vector.shape_cast %27 : vector<1x1x4x10xf32> to vector<4x10xf32>
    %cst_28 = arith.constant dense<0.000000e+00> : vector<8x10xf32>
    %29 = tpu.matmul %26, %28, %cst_28 {dimension_numbers = #tpu.dot_dimension_numbers<[1], [0], [0], [1], [0, 0, 1, 1], [], []>} : vector<8x4xf32>, vector<4x10xf32>, vector<8x10xf32> -> vector<8x10xf32>
    %30 = arith.addf %24, %29 : vector<8x10xf32>
    %31 = vector.broadcast %10 : vector<8x1xf32> to vector<8x10xf32>
    %32 = arith.addf %30, %31 : vector<8x10xf32>
    %cst_29 = arith.constant 0.000000e+00 : f32
    %33 = vector.broadcast %cst_29 : f32 to vector<8x10xf32>
    %34 = arith.maximumf %32, %33 : vector<8x10xf32>
    %cst_30 = arith.constant 0.000000e+00 : f32
    %35 = vector.shape_cast %9 : vector<1x10xi1> to vector<1x10xi1>
    %36 = vector.broadcast %35 : vector<1x10xi1> to vector<8x10xi1>
    %37 = vector.broadcast %cst_30 : f32 to vector<8x10xf32>
    %38 = arith.select %36, %34, %37 : vector<8x10xi1>, vector<8x10xf32>
    %39 = vector.extract_strided_slice %38 {offsets = [0, 0], sizes = [8, 8], strides = [1, 1]} : vector<8x10xf32> to vector<8x8xf32>
    %40 = vector.extract_strided_slice %38 {offsets = [0, 1], sizes = [8, 8], strides = [1, 1]} : vector<8x10xf32> to vector<8x8xf32>
    %41 = vector.extract_strided_slice %38 {offsets = [0, 2], sizes = [8, 8], strides = [1, 1]} : vector<8x10xf32> to vector<8x8xf32>
    %42 = tpu.concatenate %39, %40, %41 in 0 : vector<8x8xf32>, vector<8x8xf32>, vector<8x8xf32> -> vector<24x8xf32>
    %c0_31 = arith.constant 0 : index
    %c0_32 = arith.constant 0 : index
    %43 = vector.load %arg4[%c0_31, %c0_32] : memref<8x24xf32, #tpu.memory_space<vmem>>, vector<8x24xf32>
    %cst_33 = arith.constant dense<0.000000e+00> : vector<8x8xf32>
    %44 = tpu.matmul %43, %42, %cst_33 {dimension_numbers = #tpu.dot_dimension_numbers<[1], [0], [0], [1], [0, 0, 1, 1], [], []>} : vector<8x24xf32>, vector<24x8xf32>, vector<8x8xf32> -> vector<8x8xf32>
    %45 = vector.broadcast %11 : vector<8x1xf32> to vector<8x8xf32>
    %46 = arith.addf %44, %45 : vector<8x8xf32>
    %c0_34 = arith.constant 0 : index
    %c1_35 = arith.constant 1 : index
    %c0_36 = arith.constant 0 : index
    %c1_37 = arith.constant 1 : index
    %47 = vector.load %arg2[%c0_34, %c1_35, %c0_36, %c1_37] : memref<2x2x4x11xf32, #tpu.memory_space<vmem>>, vector<1x1x4x8xf32>
    %48 = vector.shape_cast %47 : vector<1x1x4x8xf32> to vector<4x8xf32>
    %cst_38 = arith.constant dense<0.000000e+00> : vector<8x8xf32>
    %49 = tpu.matmul %13, %48, %cst_38 {dimension_numbers = #tpu.dot_dimension_numbers<[1], [0], [0], [1], [0, 0, 1, 1], [], []>} : vector<8x4xf32>, vector<4x8xf32>, vector<8x8xf32> -> vector<8x8xf32>
    %50 = vector.broadcast %12 : vector<8x1xf32> to vector<8x8xf32>
    %51 = arith.addf %49, %50 : vector<8x8xf32>
    %52 = arith.addf %46, %51 : vector<8x8xf32>
    %cst_39 = arith.constant 0.000000e+00 : f32
    %53 = vector.broadcast %cst_39 : f32 to vector<8x8xf32>
    %54 = arith.maximumf %52, %53 : vector<8x8xf32>
    %c0_40 = arith.constant 0 : index
    %c0_41 = arith.constant 0 : index
    %c0_42 = arith.constant 0 : index
    %55 = vector.load %arg9[%c0_40, %c0_41, %c0_42] : memref<2x8x8xf32, #tpu.memory_space<vmem>>, vector<1x8x8xf32>
    %56 = vector.shape_cast %55 : vector<1x8x8xf32> to vector<8x8xf32>
    %57 = vector.shape_cast %54 : vector<8x8xf32> to vector<1x8x8xf32>
    tpu.vector_store %arg9[%c0_40, %c0_41, %c0_42], %57 {strides = array<i32>} : memref<2x8x8xf32, #tpu.memory_space<vmem>>, vector<1x8x8xf32>,
    %c0_43 = arith.constant 0 : index
    %c0_44 = arith.constant 0 : index
    %c0_45 = arith.constant 0 : index
    %58 = vector.load %arg3[%c0_43, %c0_44, %c0_45] : memref<3x8x4xf32, #tpu.memory_space<vmem>>, vector<1x8x4xf32>
    %59 = vector.shape_cast %58 : vector<1x8x4xf32> to vector<8x4xf32>
    %c1_46 = arith.constant 1 : index
    %c0_47 = arith.constant 0 : index
    %c0_48 = arith.constant 0 : index
    %c0_49 = arith.constant 0 : index
    %60 = vector.load %arg2[%c1_46, %c0_47, %c0_48, %c0_49] : memref<2x2x4x11xf32, #tpu.memory_space<vmem>>, vector<1x1x4x10xf32>
    %61 = vector.shape_cast %60 : vector<1x1x4x10xf32> to vector<4x10xf32>
    %cst_50 = arith.constant dense<0.000000e+00> : vector<8x10xf32>
    %62 = tpu.matmul %59, %61, %cst_50 {dimension_numbers = #tpu.dot_dimension_numbers<[1], [0], [0], [1], [0, 0, 1, 1], [], []>} : vector<8x4xf32>, vector<4x10xf32>, vector<8x10xf32> -> vector<8x10xf32>
    %c1_51 = arith.constant 1 : index
    %c0_52 = arith.constant 0 : index
    %c0_53 = arith.constant 0 : index
    %63 = vector.load %arg3[%c1_51, %c0_52, %c0_53] : memref<3x8x4xf32, #tpu.memory_space<vmem>>, vector<1x8x4xf32>
    %64 = vector.shape_cast %63 : vector<1x8x4xf32> to vector<8x4xf32>
    %c1_54 = arith.constant 1 : index
    %c1_55 = arith.constant 1 : index
    %c0_56 = arith.constant 0 : index
    %c0_57 = arith.constant 0 : index
    %65 = vector.load %arg2[%c1_54, %c1_55, %c0_56, %c0_57] : memref<2x2x4x11xf32, #tpu.memory_space<vmem>>, vector<1x1x4x10xf32>
    %66 = vector.shape_cast %65 : vector<1x1x4x10xf32> to vector<4x10xf32>
    %cst_58 = arith.constant dense<0.000000e+00> : vector<8x10xf32>
    %67 = tpu.matmul %64, %66, %cst_58 {dimension_numbers = #tpu.dot_dimension_numbers<[1], [0], [0], [1], [0, 0, 1, 1], [], []>} : vector<8x4xf32>, vector<4x10xf32>, vector<8x10xf32> -> vector<8x10xf32>
    %68 = arith.addf %62, %67 : vector<8x10xf32>
    %c2_59 = arith.constant 2 : index
    %c0_60 = arith.constant 0 : index
    %c0_61 = arith.constant 0 : index
    %69 = vector.load %arg3[%c2_59, %c0_60, %c0_61] : memref<3x8x4xf32, #tpu.memory_space<vmem>>, vector<1x8x4xf32>
    %70 = vector.shape_cast %69 : vector<1x8x4xf32> to vector<8x4xf32>
    %c1_62 = arith.constant 1 : index
    %c0_63 = arith.constant 0 : index
    %c0_64 = arith.constant 0 : index
    %c1_65 = arith.constant 1 : index
    %71 = vector.load %arg2[%c1_62, %c0_63, %c0_64, %c1_65] : memref<2x2x4x11xf32, #tpu.memory_space<vmem>>, vector<1x1x4x10xf32>
    %72 = vector.shape_cast %71 : vector<1x1x4x10xf32> to vector<4x10xf32>
    %cst_66 = arith.constant dense<0.000000e+00> : vector<8x10xf32>
    %73 = tpu.matmul %70, %72, %cst_66 {dimension_numbers = #tpu.dot_dimension_numbers<[1], [0], [0], [1], [0, 0, 1, 1], [], []>} : vector<8x4xf32>, vector<4x10xf32>, vector<8x10xf32> -> vector<8x10xf32>
    %74 = arith.addf %68, %73 : vector<8x10xf32>
    %75 = vector.broadcast %10 : vector<8x1xf32> to vector<8x10xf32>
    %76 = arith.addf %74, %75 : vector<8x10xf32>
    %cst_67 = arith.constant 0.000000e+00 : f32
    %77 = vector.broadcast %cst_67 : f32 to vector<8x10xf32>
    %78 = arith.maximumf %76, %77 : vector<8x10xf32>
    %cst_68 = arith.constant 0.000000e+00 : f32
    %79 = vector.shape_cast %9 : vector<1x10xi1> to vector<1x10xi1>
    %80 = vector.broadcast %79 : vector<1x10xi1> to vector<8x10xi1>
    %81 = vector.broadcast %cst_68 : f32 to vector<8x10xf32>
    %82 = arith.select %80, %78, %81 : vector<8x10xi1>, vector<8x10xf32>
    %83 = vector.extract_strided_slice %82 {offsets = [0, 0], sizes = [8, 8], strides = [1, 1]} : vector<8x10xf32> to vector<8x8xf32>
    %84 = vector.extract_strided_slice %82 {offsets = [0, 1], sizes = [8, 8], strides = [1, 1]} : vector<8x10xf32> to vector<8x8xf32>
    %85 = vector.extract_strided_slice %82 {offsets = [0, 2], sizes = [8, 8], strides = [1, 1]} : vector<8x10xf32> to vector<8x8xf32>
    %86 = tpu.concatenate %83, %84, %85 in 0 : vector<8x8xf32>, vector<8x8xf32>, vector<8x8xf32> -> vector<24x8xf32>
    %c0_69 = arith.constant 0 : index
    %c0_70 = arith.constant 0 : index
    %87 = vector.load %arg4[%c0_69, %c0_70] : memref<8x24xf32, #tpu.memory_space<vmem>>, vector<8x24xf32>
    %cst_71 = arith.constant dense<0.000000e+00> : vector<8x8xf32>
    %88 = tpu.matmul %87, %86, %cst_71 {dimension_numbers = #tpu.dot_dimension_numbers<[1], [0], [0], [1], [0, 0, 1, 1], [], []>} : vector<8x24xf32>, vector<24x8xf32>, vector<8x8xf32> -> vector<8x8xf32>
    %89 = vector.broadcast %11 : vector<8x1xf32> to vector<8x8xf32>
    %90 = arith.addf %88, %89 : vector<8x8xf32>
    %c1_72 = arith.constant 1 : index
    %c1_73 = arith.constant 1 : index
    %c0_74 = arith.constant 0 : index
    %c1_75 = arith.constant 1 : index
    %91 = vector.load %arg2[%c1_72, %c1_73, %c0_74, %c1_75] : memref<2x2x4x11xf32, #tpu.memory_space<vmem>>, vector<1x1x4x8xf32>
    %92 = vector.shape_cast %91 : vector<1x1x4x8xf32> to vector<4x8xf32>
    %cst_76 = arith.constant dense<0.000000e+00> : vector<8x8xf32>
    %93 = tpu.matmul %13, %92, %cst_76 {dimension_numbers = #tpu.dot_dimension_numbers<[1], [0], [0], [1], [0, 0, 1, 1], [], []>} : vector<8x4xf32>, vector<4x8xf32>, vector<8x8xf32> -> vector<8x8xf32>
    %94 = vector.broadcast %12 : vector<8x1xf32> to vector<8x8xf32>
    %95 = arith.addf %93, %94 : vector<8x8xf32>
    %96 = arith.addf %90, %95 : vector<8x8xf32>
    %cst_77 = arith.constant 0.000000e+00 : f32
    %97 = vector.broadcast %cst_77 : f32 to vector<8x8xf32>
    %98 = arith.maximumf %96, %97 : vector<8x8xf32>
    %c1_78 = arith.constant 1 : index
    %c0_79 = arith.constant 0 : index
    %c0_80 = arith.constant 0 : index
    %99 = vector.load %arg9[%c1_78, %c0_79, %c0_80] : memref<2x8x8xf32, #tpu.memory_space<vmem>>, vector<1x8x8xf32>
    %100 = vector.shape_cast %99 : vector<1x8x8xf32> to vector<8x8xf32>
    %101 = vector.shape_cast %98 : vector<8x8xf32> to vector<1x8x8xf32>
    tpu.vector_store %arg9[%c1_78, %c0_79, %c0_80], %101 {strides = array<i32>} : memref<2x8x8xf32, #tpu.memory_space<vmem>>, vector<1x8x8xf32>,
    return
  }
  func.func @transform_0(%arg0: i32, %arg1: i32) -> (i32, i32, i32, i32) {
    %c0_i32 = arith.constant 0 : i32
    %c0_i32_0 = arith.constant 0 : i32
    %c0_i32_1 = arith.constant 0 : i32
    return %arg0, %arg1, %c0_i32, %c0_i32_0 : i32, i32, i32, i32
  }
  func.func @transform_1(%arg0: i32, %arg1: i32) -> (i32, i32, i32) {
    %c0_i32 = arith.constant 0 : i32
    %c0_i32_0 = arith.constant 0 : i32
    %c0_i32_1 = arith.constant 0 : i32
    %c0_i32_2 = arith.constant 0 : i32
    return %c0_i32, %c0_i32_0, %c0_i32_1 : i32, i32, i32
  }
  func.func @transform_2(%arg0: i32, %arg1: i32) -> (i32, i32) {
    %c0_i32 = arith.constant 0 : i32
    %c0_i32_0 = arith.constant 0 : i32
    %c0_i32_1 = arith.constant 0 : i32
    return %c0_i32, %c0_i32_0 : i32, i32
  }
  func.func @transform_3(%arg0: i32, %arg1: i32) -> (i32, i32) {
    %c0_i32 = arith.constant 0 : i32
    %c0_i32_0 = arith.constant 0 : i32
    %c0_i32_1 = arith.constant 0 : i32
    return %c0_i32, %c0_i32_0 : i32, i32
  }
  func.func @transform_4(%arg0: i32, %arg1: i32) -> (i32, i32) {
    %c0_i32 = arith.constant 0 : i32
    %c0_i32_0 = arith.constant 0 : i32
    %c0_i32_1 = arith.constant 0 : i32
    return %c0_i32, %c0_i32_0 : i32, i32
  }
  func.func @transform_5(%arg0: i32, %arg1: i32) -> (i32, i32) {
    %c0_i32 = arith.constant 0 : i32
    %c0_i32_0 = arith.constant 0 : i32
    %c0_i32_1 = arith.constant 0 : i32
    return %c0_i32, %c0_i32_0 : i32, i32
  }
  func.func @transform_6(%arg0: i32, %arg1: i32) -> (i32, i32) {
    %c0_i32 = arith.constant 0 : i32
    %c0_i32_0 = arith.constant 0 : i32
    %c0_i32_1 = arith.constant 0 : i32
    return %c0_i32, %c0_i32_0 : i32, i32
  }
  func.func @transform_7(%arg0: i32, %arg1: i32) -> (i32, i32, i32) {
    %c0_i32 = arith.constant 0 : i32
    %c0_i32_0 = arith.constant 0 : i32
    return %arg0, %c0_i32, %arg1 : i32, i32, i32
  }
}

</mosaic_0001>

<llo_original>
// kernel: tpu_custom_call.1
$region0: #{tpu_custom_call.1}
  #allocation0 [shape = 'u32[]', space=smem, size = 0x4, offset = 0x4, fixed_abs, tag = 'smem constant byte address 0x4 - core index']
  #allocation1 [shape = 'u32[144,128]{1,0:T(1,128)}', space=vmem, size = 0x12000, scoped, tag = 'internal scratch']
  %s0 = inlined_call_operand.vmem [shape: f32[2,2,4,11], index: 0, kind: input, shape index: {}]
  %s1 = inlined_call_operand.vmem [shape: f32[3,8,4], index: 1, kind: input, shape index: {}]
  %s2 = inlined_call_operand.vmem [shape: f32[8,24], index: 2, kind: input, shape index: {}]
  %s3 = inlined_call_operand.vmem [shape: f32[8,4], index: 3, kind: input, shape index: {}]
  %s4 = inlined_call_operand.vmem [shape: f32[8,1], index: 4, kind: input, shape index: {}]
  %s5 = inlined_call_operand.vmem [shape: f32[8,1], index: 5, kind: input, shape index: {}]
  %s6 = inlined_call_operand.vmem [shape: f32[8,1], index: 6, kind: input, shape index: {}]
  %s7 = inlined_call_operand.hbm [shape: f32[2,8,8], index: 7, kind: output, shape index: {}]
  %s8 = sld [smem:[#allocation0]]
  $region38: #{tpu_custom_call.1} parent=0
    _
  %s10 = ssub.s32 1, %s8
  %s11 = scalar_select 0, %s10, %s8
  $region1: #{tpu_custom_call.1} parent=0
    #allocation2 [shape = 'u8[8192]{0}', space=vmem, size = 0x2000, scoped, tag = 'output window, operand 0, single buffered']
    #allocation3 [shape = 's32[1]{0}', space=sflag, size = 0x4, scoped, tag = 'scoped memory for tpu_custom_call.1']
    %12 = vsyncpa [#allocation3], 0
    // Predicated region
    $region2: #{tpu_custom_call.1} parent=1 // pred_check
      _
    $region3: #{tpu_custom_call.1} parent=1 // pred_check_branch
      %14 = sbr.rel (0) target = $region5
    $region4: #{tpu_custom_call.1} parent=1 // pred_region
      _
    $region5: #{tpu_custom_call.1} parent=1 // pred_fallthru
      _
    // Predicated region
    $region6: #{tpu_custom_call.1} parent=1 // pred_check
      _
    $region7: #{tpu_custom_call.1} parent=1 // pred_check_branch
      %16 = sbr.rel (0) target = $region9
    $region8: #{tpu_custom_call.1} parent=1 // pred_region
      _
    $region9: #{tpu_custom_call.1} parent=1 // pred_fallthru
      _
    // Predicated region
    $region10: #{tpu_custom_call.1} parent=1 // pred_check
      _
    $region11: #{tpu_custom_call.1} parent=1 // pred_check_branch
      %18 = sbr.rel (0) target = $region13
    $region12: #{tpu_custom_call.1} parent=1 // pred_region
      _
    $region13: #{tpu_custom_call.1} parent=1 // pred_fallthru
      _
    // Predicated region
    $region14: #{tpu_custom_call.1} parent=1 // pred_check
      _
    $region15: #{tpu_custom_call.1} parent=1 // pred_check_branch
      %20 = sbr.rel (0) target = $region17
    $region16: #{tpu_custom_call.1} parent=1 // pred_region
      _
    $region17: #{tpu_custom_call.1} parent=1 // pred_fallthru
      _
    // Predicated region
    $region18: #{tpu_custom_call.1} parent=1 // pred_check
      _
    $region19: #{tpu_custom_call.1} parent=1 // pred_check_branch
      %22 = sbr.rel (0) target = $region21
    $region20: #{tpu_custom_call.1} parent=1 // pred_region
      _
    $region21: #{tpu_custom_call.1} parent=1 // pred_fallthru
      _
    // Predicated region
    $region22: #{tpu_custom_call.1} parent=1 // pred_check
      _
    $region23: #{tpu_custom_call.1} parent=1 // pred_check_branch
      %24 = sbr.rel (0) target = $region25
    $region24: #{tpu_custom_call.1} parent=1 // pred_region
      _
    $region25: #{tpu_custom_call.1} parent=1 // pred_fallthru
      _
    // Predicated region
    $region26: #{tpu_custom_call.1} parent=1 // pred_check
      _
    $region27: #{tpu_custom_call.1} parent=1 // pred_check_branch
      %26 = sbr.rel (0) target = $region29
    $region28: #{tpu_custom_call.1} parent=1 // pred_region
      _
    $region29: #{tpu_custom_call.1} parent=1 // pred_fallthru
      _
    %v27 = vlaneseq
    %v28 = vand.u32 %v27, 127
    %s29 = smul.u32 0, 8
    %s30 = ssub.s32 %s29, 1
    %v31 = vstv %s30
    %v32 = vadd.s32 %v31, %v28
    %vm33 = vcmp.ge.s32.totalorder %v32, 0
    %vm34 = vcmp.lt.s32.totalorder %v32, 8
    %vm35 = vmand %vm33, %vm34
    %v36 = vld [vmem:[%s4] sm:$0xff]
    %v37 = vld [vmem:[%s5] sm:$0xff]
    %v38 = vld [vmem:[%s6] sm:$0xff]
    %v39 = vld [vmem:[%s3] sm:$0xff]
    %v40 = vld [vmem:[%s1] sm:$0xff]
    %v41 = vld [vmem:[%s0] sm:$0xf]
    %s42 = scalar_lea.vmem %s1, 8
    %v43 = vld [vmem:[%s42] sm:$0xff]
    %s44 = scalar_lea.vmem %s0, 4
    %v45 = vld [vmem:[%s44] sm:$0xf]
    %vm46 = vcmask 31744
    %v48 = vsel %vm46, %v43, 0
    %vm50 = vcmask 1043456
    %v52 = vsel %vm50, %v45, 0
    %54 = vmatprep.subr.mxu0 0.0
    %55 = vmatpush1.msra.mxu0 %v52
    %56 = vmatprep.subr.mxu0 0.0
    %57 = vmatpush1.msra.mxu0 0.0
    %58 = vmatprep.subr.mxu0 0.0
    %59 = vmatpush1.msra.mxu0 0.0
    %60 = vmatprep.subr.mxu0 0.0
    %61 = vmatpush1.msra.mxu0 0.0
    %62 = vmatprep.subr.mxu0 0.0
    %63 = vmatpush1.msra.mxu0 0.0
    %64 = vmatprep.subr.mxu0 0.0
    %65 = vmatpush1.msra.mxu0 0.0
    %66 = vmatprep.subr.mxu0 0.0
    %67 = vmatpush1.msra.mxu0 0.0
    %68 = vmatprep.subr.mxu0 0.0
    %69 = vmatpush1.msra.mxu0 0.0
    %70 = vmatprep.subr.mxu0 0.0
    %71 = vmatpush1.msra.mxu0 0.0
    %72 = vmatprep.subr.mxu0 0.0
    %73 = vmatpush1.msra.mxu0 0.0
    %74 = vmatprep.subr.mxu0 0.0
    %75 = vmatpush1.msra.mxu0 0.0
    %76 = vmatprep.subr.mxu0 0.0
    %77 = vmatpush1.msra.mxu0 0.0
    %78 = vmatprep.subr.mxu0 0.0
    %79 = vmatpush1.msra.mxu0 0.0
    %80 = vmatprep.subr.mxu0 0.0
    %81 = vmatpush1.msra.mxu0 0.0
    %82 = vmatprep.subr.mxu0 0.0
    %83 = vmatpush1.msra.mxu0 0.0
    %84 = vmatprep.subr.mxu0 0.0
    %85 = vmatpush1.msra.mxu0 0.0
    %86 = vmatprep.subr.mxu0 0.0
    %87 = vmatpush1.msra.mxu0 0.0
    %88 = vmatprep.subr.mxu0 0.0
    %89 = vmatpush1.msra.mxu0 0.0
    %90 = vmatprep.subr.mxu0 0.0
    %91 = vmatpush1.msra.mxu0 0.0
    %92 = vmatprep.subr.mxu0 0.0
    %93 = vmatpush1.msra.mxu0 0.0
    %94 = vmatprep.subr.mxu0 0.0
    %95 = vmatpush1.msra.mxu0 0.0
    %96 = vmatprep.subr.mxu0 0.0
    %97 = vmatpush1.msra.mxu0 0.0
    %98 = vmatprep.subr.mxu0 0.0
    %99 = vmatpush1.msra.mxu0 0.0
    %100 = vmatprep.subr.mxu0 0.0
    %101 = vmatpush1.msra.mxu0 0.0
    %102 = vmatprep.subr.mxu0 0.0
    %103 = vmatpush1.msra.mxu0 0.0
    %104 = vmatprep.subr.mxu0 0.0
    %105 = vmatpush1.msra.mxu0 0.0
    %106 = vmatprep.subr.mxu0 0.0
    %107 = vmatpush1.msra.mxu0 0.0
    %108 = vmatprep.subr.mxu0 0.0
    %109 = vmatpush1.msra.mxu0 0.0
    %110 = vmatprep.subr.mxu0 0.0
    %111 = vmatpush1.msra.mxu0 0.0
    %112 = vmatprep.subr.mxu0 0.0
    %113 = vmatpush1.msra.mxu0 0.0
    %114 = vmatprep.subr.mxu0 0.0
    %115 = vmatpush1.msra.mxu0 0.0
    %116 = vmatprep.subr.mxu0 0.0
    %117 = vmatpush1.msra.mxu0 0.0
    %118 = vmatprep.mubr.f32.mxu0 0.0
    %119 = vmatmul.mubr.f32.gmra.mrb[0].mxu0 %v48
    %v120 = vpop.f32.mrb[0].mxu0
    %v121 = vadd.f32 0.0, %v120
    %v122 = vpop.f32.mrb[0].mxu0
    %123 = vdwg.mxu0
    %v125 = vsel %vm46, %v40, 0
    %v128 = vsel %vm50, %v41, 0
    %130 = vmatprep.subr.mxu0 0.0
    %131 = vmatpush1.msra.mxu0 %v128
    %132 = vmatprep.subr.mxu0 0.0
    %133 = vmatpush1.msra.mxu0 0.0
    %134 = vmatprep.subr.mxu0 0.0
    %135 = vmatpush1.msra.mxu0 0.0
    %136 = vmatprep.subr.mxu0 0.0
    %137 = vmatpush1.msra.mxu0 0.0
    %138 = vmatprep.subr.mxu0 0.0
    %139 = vmatpush1.msra.mxu0 0.0
    %140 = vmatprep.subr.mxu0 0.0
    %141 = vmatpush1.msra.mxu0 0.0
    %142 = vmatprep.subr.mxu0 0.0
    %143 = vmatpush1.msra.mxu0 0.0
    %144 = vmatprep.subr.mxu0 0.0
    %145 = vmatpush1.msra.mxu0 0.0
    %146 = vmatprep.subr.mxu0 0.0
    %147 = vmatpush1.msra.mxu0 0.0
    %148 = vmatprep.subr.mxu0 0.0
    %149 = vmatpush1.msra.mxu0 0.0
    %150 = vmatprep.subr.mxu0 0.0
    %151 = vmatpush1.msra.mxu0 0.0
    %152 = vmatprep.subr.mxu0 0.0
    %153 = vmatpush1.msra.mxu0 0.0
    %154 = vmatprep.subr.mxu0 0.0
    %155 = vmatpush1.msra.mxu0 0.0
    %156 = vmatprep.subr.mxu0 0.0
    %157 = vmatpush1.msra.mxu0 0.0
    %158 = vmatprep.subr.mxu0 0.0
    %159 = vmatpush1.msra.mxu0 0.0
    %160 = vmatprep.subr.mxu0 0.0
    %161 = vmatpush1.msra.mxu0 0.0
    %162 = vmatprep.subr.mxu0 0.0
    %163 = vmatpush1.msra.mxu0 0.0
    %164 = vmatprep.subr.mxu0 0.0
    %165 = vmatpush1.msra.mxu0 0.0
    %166 = vmatprep.subr.mxu0 0.0
    %167 = vmatpush1.msra.mxu0 0.0
    %168 = vmatprep.subr.mxu0 0.0
    %169 = vmatpush1.msra.mxu0 0.0
    %170 = vmatprep.subr.mxu0 0.0
    %171 = vmatpush1.msra.mxu0 0.0
    %172 = vmatprep.subr.mxu0 0.0
    %173 = vmatpush1.msra.mxu0 0.0
    %174 = vmatprep.subr.mxu0 0.0
    %175 = vmatpush1.msra.mxu0 0.0
    %176 = vmatprep.subr.mxu0 0.0
    %177 = vmatpush1.msra.mxu0 0.0
    %178 = vmatprep.subr.mxu0 0.0
    %179 = vmatpush1.msra.mxu0 0.0
    %180 = vmatprep.subr.mxu0 0.0
    %181 = vmatpush1.msra.mxu0 0.0
    %182 = vmatprep.subr.mxu0 0.0
    %183 = vmatpush1.msra.mxu0 0.0
    %184 = vmatprep.subr.mxu0 0.0
    %185 = vmatpush1.msra.mxu0 0.0
    %186 = vmatprep.subr.mxu0 0.0
    %187 = vmatpush1.msra.mxu0 0.0
    %188 = vmatprep.subr.mxu0 0.0
    %189 = vmatpush1.msra.mxu0 0.0
    %190 = vmatprep.subr.mxu0 0.0
    %191 = vmatpush1.msra.mxu0 0.0
    %192 = vmatprep.subr.mxu0 0.0
    %193 = vmatpush1.msra.mxu0 0.0
    %194 = vmatprep.mubr.f32.mxu0 0.0
    %195 = vmatmul.mubr.f32.gmra.mrb[0].mxu0 %v125
    %v196 = vpop.f32.mrb[0].mxu0
    %v197 = vadd.f32 %v121, %v196
    %v198 = vpop.f32.mrb[0].mxu0
    %199 = vdwg.mxu0
    %s200 = scalar_lea.vmem %s1, 16
    %v201 = vld [vmem:[%s200] sm:$0xff]
    %202 = vrot.lane.b32.xlu0 %v41, 127
    %v203 = vpop.permute.xlu0 %202
    %v205 = vsel %vm46, %v201, 0
    %v207 = vsel %vm50, %v203, 0
    %209 = vmatprep.subr.mxu0 0.0
    %210 = vmatpush1.msra.mxu0 %v207
    %211 = vmatprep.subr.mxu0 0.0
    %212 = vmatpush1.msra.mxu0 0.0
    %213 = vmatprep.subr.mxu0 0.0
    %214 = vmatpush1.msra.mxu0 0.0
    %215 = vmatprep.subr.mxu0 0.0
    %216 = vmatpush1.msra.mxu0 0.0
    %217 = vmatprep.subr.mxu0 0.0
    %218 = vmatpush1.msra.mxu0 0.0
    %219 = vmatprep.subr.mxu0 0.0
    %220 = vmatpush1.msra.mxu0 0.0
    %221 = vmatprep.subr.mxu0 0.0
    %222 = vmatpush1.msra.mxu0 0.0
    %223 = vmatprep.subr.mxu0 0.0
    %224 = vmatpush1.msra.mxu0 0.0
    %225 = vmatprep.subr.mxu0 0.0
    %226 = vmatpush1.msra.mxu0 0.0
    %227 = vmatprep.subr.mxu0 0.0
    %228 = vmatpush1.msra.mxu0 0.0
    %229 = vmatprep.subr.mxu0 0.0
    %230 = vmatpush1.msra.mxu0 0.0
    %231 = vmatprep.subr.mxu0 0.0
    %232 = vmatpush1.msra.mxu0 0.0
    %233 = vmatprep.subr.mxu0 0.0
    %234 = vmatpush1.msra.mxu0 0.0
    %235 = vmatprep.subr.mxu0 0.0
    %236 = vmatpush1.msra.mxu0 0.0
    %237 = vmatprep.subr.mxu0 0.0
    %238 = vmatpush1.msra.mxu0 0.0
    %239 = vmatprep.subr.mxu0 0.0
    %240 = vmatpush1.msra.mxu0 0.0
    %241 = vmatprep.subr.mxu0 0.0
    %242 = vmatpush1.msra.mxu0 0.0
    %243 = vmatprep.subr.mxu0 0.0
    %244 = vmatpush1.msra.mxu0 0.0
    %245 = vmatprep.subr.mxu0 0.0
    %246 = vmatpush1.msra.mxu0 0.0
    %247 = vmatprep.subr.mxu0 0.0
    %248 = vmatpush1.msra.mxu0 0.0
    %249 = vmatprep.subr.mxu0 0.0
    %250 = vmatpush1.msra.mxu0 0.0
    %251 = vmatprep.subr.mxu0 0.0
    %252 = vmatpush1.msra.mxu0 0.0
    %253 = vmatprep.subr.mxu0 0.0
    %254 = vmatpush1.msra.mxu0 0.0
    %255 = vmatprep.subr.mxu0 0.0
    %256 = vmatpush1.msra.mxu0 0.0
    %257 = vmatprep.subr.mxu0 0.0
    %258 = vmatpush1.msra.mxu0 0.0
    %259 = vmatprep.subr.mxu0 0.0
    %260 = vmatpush1.msra.mxu0 0.0
    %261 = vmatprep.subr.mxu0 0.0
    %262 = vmatpush1.msra.mxu0 0.0
    %263 = vmatprep.subr.mxu0 0.0
    %264 = vmatpush1.msra.mxu0 0.0
    %265 = vmatprep.subr.mxu0 0.0
    %266 = vmatpush1.msra.mxu0 0.0
    %267 = vmatprep.subr.mxu0 0.0
    %268 = vmatpush1.msra.mxu0 0.0
    %269 = vmatprep.subr.mxu0 0.0
    %270 = vmatpush1.msra.mxu0 0.0
    %271 = vmatprep.subr.mxu0 0.0
    %272 = vmatpush1.msra.mxu0 0.0
    %273 = vmatprep.mubr.f32.mxu0 0.0
    %274 = vmatmul.mubr.f32.gmra.mrb[0].mxu0 %v205
    %v275 = vpop.f32.mrb[0].mxu0
    %v276 = vadd.f32 0.0, %v275
    %v277 = vpop.f32.mrb[0].mxu0
    %278 = vdwg.mxu0
    %v279 = vadd.f32 %v197, %v276
    %281 = vset.pattern.permute.xlu0 0
    %282 = vperm.xlu0 %281, %v36
    %v283 = vpop.permute.xlu0 %282
    %v285 = vadd.f32 %v279, %v283
    %v286 = vmax.f32 %v285, 0.0
    %v287 = vsel %vm35, 1, 0
    %vm288 = vcmp.eq.s32.totalorder %v287, 1
    %v289 = vsel %vm288, %v286, 0.0
    %291 = vrot.lane.b32.xlu0 %v289, 127
    %v292 = vpop.permute.xlu0 %291
    %294 = vrot.lane.b32.xlu0 %v289, 126
    %v295 = vpop.permute.xlu0 %294
    %v297 = vld [vmem:[%s2] sm:$0xff]
    %299 = vset.pattern.permute.xlu0 0
    %300 = vperm.xlu0 %299, %v37
    %v301 = vpop.permute.xlu0 %300
    %vm303 = vcmask 195584
    %v305 = vsel %vm303, %v297, 0
    %307 = vmatprep.subr.mxu0 0.0
    %308 = vmatpush1.msra.mxu0 %v289
    %309 = vmatprep.subr.mxu0 0.0
    %310 = vmatpush1.msra.mxu0 %v292
    %311 = vmatprep.subr.mxu0 0.0
    %312 = vmatpush1.msra.mxu0 %v295
    %313 = vmatprep.subr.mxu0 0.0
    %314 = vmatpush1.msra.mxu0 0.0
    %315 = vmatprep.subr.mxu0 0.0
    %316 = vmatpush1.msra.mxu0 0.0
    %317 = vmatprep.subr.mxu0 0.0
    %318 = vmatpush1.msra.mxu0 0.0
    %319 = vmatprep.subr.mxu0 0.0
    %320 = vmatpush1.msra.mxu0 0.0
    %321 = vmatprep.subr.mxu0 0.0
    %322 = vmatpush1.msra.mxu0 0.0
    %323 = vmatprep.subr.mxu0 0.0
    %324 = vmatpush1.msra.mxu0 0.0
    %325 = vmatprep.subr.mxu0 0.0
    %326 = vmatpush1.msra.mxu0 0.0
    %327 = vmatprep.subr.mxu0 0.0
    %328 = vmatpush1.msra.mxu0 0.0
    %329 = vmatprep.subr.mxu0 0.0
    %330 = vmatpush1.msra.mxu0 0.0
    %331 = vmatprep.subr.mxu0 0.0
    %332 = vmatpush1.msra.mxu0 0.0
    %333 = vmatprep.subr.mxu0 0.0
    %334 = vmatpush1.msra.mxu0 0.0
    %335 = vmatprep.subr.mxu0 0.0
    %336 = vmatpush1.msra.mxu0 0.0
    %337 = vmatprep.subr.mxu0 0.0
    %338 = vmatpush1.msra.mxu0 0.0
    %339 = vmatprep.subr.mxu0 0.0
    %340 = vmatpush1.msra.mxu0 0.0
    %341 = vmatprep.subr.mxu0 0.0
    %342 = vmatpush1.msra.mxu0 0.0
    %343 = vmatprep.subr.mxu0 0.0
    %344 = vmatpush1.msra.mxu0 0.0
    %345 = vmatprep.subr.mxu0 0.0
    %346 = vmatpush1.msra.mxu0 0.0
    %347 = vmatprep.subr.mxu0 0.0
    %348 = vmatpush1.msra.mxu0 0.0
    %349 = vmatprep.subr.mxu0 0.0
    %350 = vmatpush1.msra.mxu0 0.0
    %351 = vmatprep.subr.mxu0 0.0
    %352 = vmatpush1.msra.mxu0 0.0
    %353 = vmatprep.subr.mxu0 0.0
    %354 = vmatpush1.msra.mxu0 0.0
    %355 = vmatprep.subr.mxu0 0.0
    %356 = vmatpush1.msra.mxu0 0.0
    %357 = vmatprep.subr.mxu0 0.0
    %358 = vmatpush1.msra.mxu0 0.0
    %359 = vmatprep.subr.mxu0 0.0
    %360 = vmatpush1.msra.mxu0 0.0
    %361 = vmatprep.subr.mxu0 0.0
    %362 = vmatpush1.msra.mxu0 0.0
    %363 = vmatprep.subr.mxu0 0.0
    %364 = vmatpush1.msra.mxu0 0.0
    %365 = vmatprep.subr.mxu0 0.0
    %366 = vmatpush1.msra.mxu0 0.0
    %367 = vmatprep.subr.mxu0 0.0
    %368 = vmatpush1.msra.mxu0 0.0
    %369 = vmatprep.subr.mxu0 0.0
    %370 = vmatpush1.msra.mxu0 0.0
    %371 = vmatprep.mubr.f32.mxu0 0.0
    %372 = vmatmul.mubr.f32.gmra.mrb[0].mxu0 %v305
    %v373 = vpop.f32.mrb[0].mxu0
    %v374 = vadd.f32 %v301, %v373
    %v375 = vpop.f32.mrb[0].mxu0
    %376 = vdwg.mxu0
    %378 = vset.pattern.permute.xlu0 0
    %379 = vperm.xlu0 %378, %v38
    %v380 = vpop.permute.xlu0 %379
    %382 = vrot.lane.b32.xlu0 %v45, 127
    %v383 = vpop.permute.xlu0 %382
    %v385 = vsel %vm46, %v39, 0
    %v387 = vsel %vm50, %v383, 0
    %389 = vmatprep.subr.mxu0 0.0
    %390 = vmatpush1.msra.mxu0 %v387
    %391 = vmatprep.subr.mxu0 0.0
    %392 = vmatpush1.msra.mxu0 0.0
    %393 = vmatprep.subr.mxu0 0.0
    %394 = vmatpush1.msra.mxu0 0.0
    %395 = vmatprep.subr.mxu0 0.0
    %396 = vmatpush1.msra.mxu0 0.0
    %397 = vmatprep.subr.mxu0 0.0
    %398 = vmatpush1.msra.mxu0 0.0
    %399 = vmatprep.subr.mxu0 0.0
    %400 = vmatpush1.msra.mxu0 0.0
    %401 = vmatprep.subr.mxu0 0.0
    %402 = vmatpush1.msra.mxu0 0.0
    %403 = vmatprep.subr.mxu0 0.0
    %404 = vmatpush1.msra.mxu0 0.0
    %405 = vmatprep.subr.mxu0 0.0
    %406 = vmatpush1.msra.mxu0 0.0
    %407 = vmatprep.subr.mxu0 0.0
    %408 = vmatpush1.msra.mxu0 0.0
    %409 = vmatprep.subr.mxu0 0.0
    %410 = vmatpush1.msra.mxu0 0.0
    %411 = vmatprep.subr.mxu0 0.0
    %412 = vmatpush1.msra.mxu0 0.0
    %413 = vmatprep.subr.mxu0 0.0
    %414 = vmatpush1.msra.mxu0 0.0
    %415 = vmatprep.subr.mxu0 0.0
    %416 = vmatpush1.msra.mxu0 0.0
    %417 = vmatprep.subr.mxu0 0.0
    %418 = vmatpush1.msra.mxu0 0.0
    %419 = vmatprep.subr.mxu0 0.0
    %420 = vmatpush1.msra.mxu0 0.0
    %421 = vmatprep.subr.mxu0 0.0
    %422 = vmatpush1.msra.mxu0 0.0
    %423 = vmatprep.subr.mxu0 0.0
    %424 = vmatpush1.msra.mxu0 0.0
    %425 = vmatprep.subr.mxu0 0.0
    %426 = vmatpush1.msra.mxu0 0.0
    %427 = vmatprep.subr.mxu0 0.0
    %428 = vmatpush1.msra.mxu0 0.0
    %429 = vmatprep.subr.mxu0 0.0
    %430 = vmatpush1.msra.mxu0 0.0
    %431 = vmatprep.subr.mxu0 0.0
    %432 = vmatpush1.msra.mxu0 0.0
    %433 = vmatprep.subr.mxu0 0.0
    %434 = vmatpush1.msra.mxu0 0.0
    %435 = vmatprep.subr.mxu0 0.0
    %436 = vmatpush1.msra.mxu0 0.0
    %437 = vmatprep.subr.mxu0 0.0
    %438 = vmatpush1.msra.mxu0 0.0
    %439 = vmatprep.subr.mxu0 0.0
    %440 = vmatpush1.msra.mxu0 0.0
    %441 = vmatprep.subr.mxu0 0.0
    %442 = vmatpush1.msra.mxu0 0.0
    %443 = vmatprep.subr.mxu0 0.0
    %444 = vmatpush1.msra.mxu0 0.0
    %445 = vmatprep.subr.mxu0 0.0
    %446 = vmatpush1.msra.mxu0 0.0
    %447 = vmatprep.subr.mxu0 0.0
    %448 = vmatpush1.msra.mxu0 0.0
    %449 = vmatprep.subr.mxu0 0.0
    %450 = vmatpush1.msra.mxu0 0.0
    %451 = vmatprep.subr.mxu0 0.0
    %452 = vmatpush1.msra.mxu0 0.0
    %453 = vmatprep.mubr.f32.mxu0 0.0
    %454 = vmatmul.mubr.f32.gmra.mrb[0].mxu0 %v385
    %v455 = vpop.f32.mrb[0].mxu0
    %v456 = vadd.f32 %v380, %v455
    %v457 = vpop.f32.mrb[0].mxu0
    %458 = vdwg.mxu0
    %v459 = vadd.f32 %v374, %v456
    %v460 = vmax.f32 %v459, 0.0
    %vm461 = vcmask 64512
    %462 = vst.msk [vmem:[#allocation2] sm:$0xff] %vm461, %v460
    %v463 = vld [vmem:[%s1] sm:$0xff]
    %s464 = scalar_lea.vmem %s0, 8
    %v465 = vld [vmem:[%s464] sm:$0xf]
    %v466 = vld [vmem:[%s42] sm:$0xff]
    %s467 = scalar_lea.vmem %s0, 12
    %v468 = vld [vmem:[%s467] sm:$0xf]
    %v470 = vsel %vm46, %v466, 0
    %v473 = vsel %vm50, %v468, 0
    %475 = vmatprep.subr.mxu0 0.0
    %476 = vmatpush1.msra.mxu0 %v473
    %477 = vmatprep.subr.mxu0 0.0
    %478 = vmatpush1.msra.mxu0 0.0
    %479 = vmatprep.subr.mxu0 0.0
    %480 = vmatpush1.msra.mxu0 0.0
    %481 = vmatprep.subr.mxu0 0.0
    %482 = vmatpush1.msra.mxu0 0.0
    %483 = vmatprep.subr.mxu0 0.0
    %484 = vmatpush1.msra.mxu0 0.0
    %485 = vmatprep.subr.mxu0 0.0
    %486 = vmatpush1.msra.mxu0 0.0
    %487 = vmatprep.subr.mxu0 0.0
    %488 = vmatpush1.msra.mxu0 0.0
    %489 = vmatprep.subr.mxu0 0.0
    %490 = vmatpush1.msra.mxu0 0.0
    %491 = vmatprep.subr.mxu0 0.0
    %492 = vmatpush1.msra.mxu0 0.0
    %493 = vmatprep.subr.mxu0 0.0
    %494 = vmatpush1.msra.mxu0 0.0
    %495 = vmatprep.subr.mxu0 0.0
    %496 = vmatpush1.msra.mxu0 0.0
    %497 = vmatprep.subr.mxu0 0.0
    %498 = vmatpush1.msra.mxu0 0.0
    %499 = vmatprep.subr.mxu0 0.0
    %500 = vmatpush1.msra.mxu0 0.0
    %501 = vmatprep.subr.mxu0 0.0
    %502 = vmatpush1.msra.mxu0 0.0
    %503 = vmatprep.subr.mxu0 0.0
    %504 = vmatpush1.msra.mxu0 0.0
    %505 = vmatprep.subr.mxu0 0.0
    %506 = vmatpush1.msra.mxu0 0.0
    %507 = vmatprep.subr.mxu0 0.0
    %508 = vmatpush1.msra.mxu0 0.0
    %509 = vmatprep.subr.mxu0 0.0
    %510 = vmatpush1.msra.mxu0 0.0
    %511 = vmatprep.subr.mxu0 0.0
    %512 = vmatpush1.msra.mxu0 0.0
    %513 = vmatprep.subr.mxu0 0.0
    %514 = vmatpush1.msra.mxu0 0.0
    %515 = vmatprep.subr.mxu0 0.0
    %516 = vmatpush1.msra.mxu0 0.0
    %517 = vmatprep.subr.mxu0 0.0
    %518 = vmatpush1.msra.mxu0 0.0
    %519 = vmatprep.subr.mxu0 0.0
    %520 = vmatpush1.msra.mxu0 0.0
    %521 = vmatprep.subr.mxu0 0.0
    %522 = vmatpush1.msra.mxu0 0.0
    %523 = vmatprep.subr.mxu0 0.0
    %524 = vmatpush1.msra.mxu0 0.0
    %525 = vmatprep.subr.mxu0 0.0
    %526 = vmatpush1.msra.mxu0 0.0
    %527 = vmatprep.subr.mxu0 0.0
    %528 = vmatpush1.msra.mxu0 0.0
    %529 = vmatprep.subr.mxu0 0.0
    %530 = vmatpush1.msra.mxu0 0.0
    %531 = vmatprep.subr.mxu0 0.0
    %532 = vmatpush1.msra.mxu0 0.0
    %533 = vmatprep.subr.mxu0 0.0
    %534 = vmatpush1.msra.mxu0 0.0
    %535 = vmatprep.subr.mxu0 0.0
    %536 = vmatpush1.msra.mxu0 0.0
    %537 = vmatprep.subr.mxu0 0.0
    %538 = vmatpush1.msra.mxu0 0.0
    %539 = vmatprep.mubr.f32.mxu0 0.0
    %540 = vmatmul.mubr.f32.gmra.mrb[0].mxu0 %v470
    %v541 = vpop.f32.mrb[0].mxu0
    %v542 = vadd.f32 0.0, %v541
    %v543 = vpop.f32.mrb[0].mxu0
    %544 = vdwg.mxu0
    %v546 = vsel %vm46, %v463, 0
    %v549 = vsel %vm50, %v465, 0
    %551 = vmatprep.subr.mxu0 0.0
    %552 = vmatpush1.msra.mxu0 %v549
    %553 = vmatprep.subr.mxu0 0.0
    %554 = vmatpush1.msra.mxu0 0.0
    %555 = vmatprep.subr.mxu0 0.0
    %556 = vmatpush1.msra.mxu0 0.0
    %557 = vmatprep.subr.mxu0 0.0
    %558 = vmatpush1.msra.mxu0 0.0
    %559 = vmatprep.subr.mxu0 0.0
    %560 = vmatpush1.msra.mxu0 0.0
    %561 = vmatprep.subr.mxu0 0.0
    %562 = vmatpush1.msra.mxu0 0.0
    %563 = vmatprep.subr.mxu0 0.0
    %564 = vmatpush1.msra.mxu0 0.0
    %565 = vmatprep.subr.mxu0 0.0
    %566 = vmatpush1.msra.mxu0 0.0
    %567 = vmatprep.subr.mxu0 0.0
    %568 = vmatpush1.msra.mxu0 0.0
    %569 = vmatprep.subr.mxu0 0.0
    %570 = vmatpush1.msra.mxu0 0.0
    %571 = vmatprep.subr.mxu0 0.0
    %572 = vmatpush1.msra.mxu0 0.0
    %573 = vmatprep.subr.mxu0 0.0
    %574 = vmatpush1.msra.mxu0 0.0
    %575 = vmatprep.subr.mxu0 0.0
    %576 = vmatpush1.msra.mxu0 0.0
    %577 = vmatprep.subr.mxu0 0.0
    %578 = vmatpush1.msra.mxu0 0.0
    %579 = vmatprep.subr.mxu0 0.0
    %580 = vmatpush1.msra.mxu0 0.0
    %581 = vmatprep.subr.mxu0 0.0
    %582 = vmatpush1.msra.mxu0 0.0
    %583 = vmatprep.subr.mxu0 0.0
    %584 = vmatpush1.msra.mxu0 0.0
    %585 = vmatprep.subr.mxu0 0.0
    %586 = vmatpush1.msra.mxu0 0.0
    %587 = vmatprep.subr.mxu0 0.0
    %588 = vmatpush1.msra.mxu0 0.0
    %589 = vmatprep.subr.mxu0 0.0
    %590 = vmatpush1.msra.mxu0 0.0
    %591 = vmatprep.subr.mxu0 0.0
    %592 = vmatpush1.msra.mxu0 0.0
    %593 = vmatprep.subr.mxu0 0.0
    %594 = vmatpush1.msra.mxu0 0.0
    %595 = vmatprep.subr.mxu0 0.0
    %596 = vmatpush1.msra.mxu0 0.0
    %597 = vmatprep.subr.mxu0 0.0
    %598 = vmatpush1.msra.mxu0 0.0
    %599 = vmatprep.subr.mxu0 0.0
    %600 = vmatpush1.msra.mxu0 0.0
    %601 = vmatprep.subr.mxu0 0.0
    %602 = vmatpush1.msra.mxu0 0.0
    %603 = vmatprep.subr.mxu0 0.0
    %604 = vmatpush1.msra.mxu0 0.0
    %605 = vmatprep.subr.mxu0 0.0
    %606 = vmatpush1.msra.mxu0 0.0
    %607 = vmatprep.subr.mxu0 0.0
    %608 = vmatpush1.msra.mxu0 0.0
    %609 = vmatprep.subr.mxu0 0.0
    %610 = vmatpush1.msra.mxu0 0.0
    %611 = vmatprep.subr.mxu0 0.0
    %612 = vmatpush1.msra.mxu0 0.0
    %613 = vmatprep.subr.mxu0 0.0
    %614 = vmatpush1.msra.mxu0 0.0
    %615 = vmatprep.mubr.f32.mxu0 0.0
    %616 = vmatmul.mubr.f32.gmra.mrb[0].mxu0 %v546
    %v617 = vpop.f32.mrb[0].mxu0
    %v618 = vadd.f32 %v542, %v617
    %v619 = vpop.f32.mrb[0].mxu0
    %620 = vdwg.mxu0
    %v621 = vld [vmem:[%s200] sm:$0xff]
    %622 = vrot.lane.b32.xlu0 %v465, 127
    %v623 = vpop.permute.xlu0 %622
    %v625 = vsel %vm46, %v621, 0
    %v627 = vsel %vm50, %v623, 0
    %629 = vmatprep.subr.mxu0 0.0
    %630 = vmatpush1.msra.mxu0 %v627
    %631 = vmatprep.subr.mxu0 0.0
    %632 = vmatpush1.msra.mxu0 0.0
    %633 = vmatprep.subr.mxu0 0.0
    %634 = vmatpush1.msra.mxu0 0.0
    %635 = vmatprep.subr.mxu0 0.0
    %636 = vmatpush1.msra.mxu0 0.0
    %637 = vmatprep.subr.mxu0 0.0
    %638 = vmatpush1.msra.mxu0 0.0
    %639 = vmatprep.subr.mxu0 0.0
    %640 = vmatpush1.msra.mxu0 0.0
    %641 = vmatprep.subr.mxu0 0.0
    %642 = vmatpush1.msra.mxu0 0.0
    %643 = vmatprep.subr.mxu0 0.0
    %644 = vmatpush1.msra.mxu0 0.0
    %645 = vmatprep.subr.mxu0 0.0
    %646 = vmatpush1.msra.mxu0 0.0
    %647 = vmatprep.subr.mxu0 0.0
    %648 = vmatpush1.msra.mxu0 0.0
    %649 = vmatprep.subr.mxu0 0.0
    %650 = vmatpush1.msra.mxu0 0.0
    %651 = vmatprep.subr.mxu0 0.0
    %652 = vmatpush1.msra.mxu0 0.0
    %653 = vmatprep.subr.mxu0 0.0
    %654 = vmatpush1.msra.mxu0 0.0
    %655 = vmatprep.subr.mxu0 0.0
    %656 = vmatpush1.msra.mxu0 0.0
    %657 = vmatprep.subr.mxu0 0.0
    %658 = vmatpush1.msra.mxu0 0.0
    %659 = vmatprep.subr.mxu0 0.0
    %660 = vmatpush1.msra.mxu0 0.0
    %661 = vmatprep.subr.mxu0 0.0
    %662 = vmatpush1.msra.mxu0 0.0
    %663 = vmatprep.subr.mxu0 0.0
    %664 = vmatpush1.msra.mxu0 0.0
    %665 = vmatprep.subr.mxu0 0.0
    %666 = vmatpush1.msra.mxu0 0.0
    %667 = vmatprep.subr.mxu0 0.0
    %668 = vmatpush1.msra.mxu0 0.0
    %669 = vmatprep.subr.mxu0 0.0
    %670 = vmatpush1.msra.mxu0 0.0
    %671 = vmatprep.subr.mxu0 0.0
    %672 = vmatpush1.msra.mxu0 0.0
    %673 = vmatprep.subr.mxu0 0.0
    %674 = vmatpush1.msra.mxu0 0.0
    %675 = vmatprep.subr.mxu0 0.0
    %676 = vmatpush1.msra.mxu0 0.0
    %677 = vmatprep.subr.mxu0 0.0
    %678 = vmatpush1.msra.mxu0 0.0
    %679 = vmatprep.subr.mxu0 0.0
    %680 = vmatpush1.msra.mxu0 0.0
    %681 = vmatprep.subr.mxu0 0.0
    %682 = vmatpush1.msra.mxu0 0.0
    %683 = vmatprep.subr.mxu0 0.0
    %684 = vmatpush1.msra.mxu0 0.0
    %685 = vmatprep.subr.mxu0 0.0
    %686 = vmatpush1.msra.mxu0 0.0
    %687 = vmatprep.subr.mxu0 0.0
    %688 = vmatpush1.msra.mxu0 0.0
    %689 = vmatprep.subr.mxu0 0.0
    %690 = vmatpush1.msra.mxu0 0.0
    %691 = vmatprep.subr.mxu0 0.0
    %692 = vmatpush1.msra.mxu0 0.0
    %693 = vmatprep.mubr.f32.mxu0 0.0
    %694 = vmatmul.mubr.f32.gmra.mrb[0].mxu0 %v625
    %v695 = vpop.f32.mrb[0].mxu0
    %v696 = vadd.f32 0.0, %v695
    %v697 = vpop.f32.mrb[0].mxu0
    %698 = vdwg.mxu0
    %v699 = vadd.f32 %v618, %v696
    %v700 = vadd.f32 %v699, %v283
    %v701 = vmax.f32 %v700, 0.0
    %v702 = vsel %vm288, %v701, 0.0
    %704 = vrot.lane.b32.xlu0 %v702, 127
    %v705 = vpop.permute.xlu0 %704
    %707 = vrot.lane.b32.xlu0 %v702, 126
    %v708 = vpop.permute.xlu0 %707
    %v710 = vld [vmem:[%s2] sm:$0xff]
    %v712 = vsel %vm303, %v710, 0
    %714 = vmatprep.subr.mxu0 0.0
    %715 = vmatpush1.msra.mxu0 %v702
    %716 = vmatprep.subr.mxu0 0.0
    %717 = vmatpush1.msra.mxu0 %v705
    %718 = vmatprep.subr.mxu0 0.0
    %719 = vmatpush1.msra.mxu0 %v708
    %720 = vmatprep.subr.mxu0 0.0
    %721 = vmatpush1.msra.mxu0 0.0
    %722 = vmatprep.subr.mxu0 0.0
    %723 = vmatpush1.msra.mxu0 0.0
    %724 = vmatprep.subr.mxu0 0.0
    %725 = vmatpush1.msra.mxu0 0.0
    %726 = vmatprep.subr.mxu0 0.0
    %727 = vmatpush1.msra.mxu0 0.0
    %728 = vmatprep.subr.mxu0 0.0
    %729 = vmatpush1.msra.mxu0 0.0
    %730 = vmatprep.subr.mxu0 0.0
    %731 = vmatpush1.msra.mxu0 0.0
    %732 = vmatprep.subr.mxu0 0.0
    %733 = vmatpush1.msra.mxu0 0.0
    %734 = vmatprep.subr.mxu0 0.0
    %735 = vmatpush1.msra.mxu0 0.0
    %736 = vmatprep.subr.mxu0 0.0
    %737 = vmatpush1.msra.mxu0 0.0
    %738 = vmatprep.subr.mxu0 0.0
    %739 = vmatpush1.msra.mxu0 0.0
    %740 = vmatprep.subr.mxu0 0.0
    %741 = vmatpush1.msra.mxu0 0.0
    %742 = vmatprep.subr.mxu0 0.0
    %743 = vmatpush1.msra.mxu0 0.0
    %744 = vmatprep.subr.mxu0 0.0
    %745 = vmatpush1.msra.mxu0 0.0
    %746 = vmatprep.subr.mxu0 0.0
    %747 = vmatpush1.msra.mxu0 0.0
    %748 = vmatprep.subr.mxu0 0.0
    %749 = vmatpush1.msra.mxu0 0.0
    %750 = vmatprep.subr.mxu0 0.0
    %751 = vmatpush1.msra.mxu0 0.0
    %752 = vmatprep.subr.mxu0 0.0
    %753 = vmatpush1.msra.mxu0 0.0
    %754 = vmatprep.subr.mxu0 0.0
    %755 = vmatpush1.msra.mxu0 0.0
    %756 = vmatprep.subr.mxu0 0.0
    %757 = vmatpush1.msra.mxu0 0.0
    %758 = vmatprep.subr.mxu0 0.0
    %759 = vmatpush1.msra.mxu0 0.0
    %760 = vmatprep.subr.mxu0 0.0
    %761 = vmatpush1.msra.mxu0 0.0
    %762 = vmatprep.subr.mxu0 0.0
    %763 = vmatpush1.msra.mxu0 0.0
    %764 = vmatprep.subr.mxu0 0.0
    %765 = vmatpush1.msra.mxu0 0.0
    %766 = vmatprep.subr.mxu0 0.0
    %767 = vmatpush1.msra.mxu0 0.0
    %768 = vmatprep.subr.mxu0 0.0
    %769 = vmatpush1.msra.mxu0 0.0
    %770 = vmatprep.subr.mxu0 0.0
    %771 = vmatpush1.msra.mxu0 0.0
    %772 = vmatprep.subr.mxu0 0.0
    %773 = vmatpush1.msra.mxu0 0.0
    %774 = vmatprep.subr.mxu0 0.0
    %775 = vmatpush1.msra.mxu0 0.0
    %776 = vmatprep.subr.mxu0 0.0
    %777 = vmatpush1.msra.mxu0 0.0
    %778 = vmatprep.mubr.f32.mxu0 0.0
    %779 = vmatmul.mubr.f32.gmra.mrb[0].mxu0 %v712
    %v780 = vpop.f32.mrb[0].mxu0
    %v781 = vadd.f32 %v301, %v780
    %v782 = vpop.f32.mrb[0].mxu0
    %783 = vdwg.mxu0
    %784 = vrot.lane.b32.xlu0 %v468, 127
    %v785 = vpop.permute.xlu0 %784
    %v786 = vsel %vm50, %v785, 0
    %788 = vmatprep.subr.mxu0 0.0
    %789 = vmatpush1.msra.mxu0 %v786
    %790 = vmatprep.subr.mxu0 0.0
    %791 = vmatpush1.msra.mxu0 0.0
    %792 = vmatprep.subr.mxu0 0.0
    %793 = vmatpush1.msra.mxu0 0.0
    %794 = vmatprep.subr.mxu0 0.0
    %795 = vmatpush1.msra.mxu0 0.0
    %796 = vmatprep.subr.mxu0 0.0
    %797 = vmatpush1.msra.mxu0 0.0
    %798 = vmatprep.subr.mxu0 0.0
    %799 = vmatpush1.msra.mxu0 0.0
    %800 = vmatprep.subr.mxu0 0.0
    %801 = vmatpush1.msra.mxu0 0.0
    %802 = vmatprep.subr.mxu0 0.0
    %803 = vmatpush1.msra.mxu0 0.0
    %804 = vmatprep.subr.mxu0 0.0
    %805 = vmatpush1.msra.mxu0 0.0
    %806 = vmatprep.subr.mxu0 0.0
    %807 = vmatpush1.msra.mxu0 0.0
    %808 = vmatprep.subr.mxu0 0.0
    %809 = vmatpush1.msra.mxu0 0.0
    %810 = vmatprep.subr.mxu0 0.0
    %811 = vmatpush1.msra.mxu0 0.0
    %812 = vmatprep.subr.mxu0 0.0
    %813 = vmatpush1.msra.mxu0 0.0
    %814 = vmatprep.subr.mxu0 0.0
    %815 = vmatpush1.msra.mxu0 0.0
    %816 = vmatprep.subr.mxu0 0.0
    %817 = vmatpush1.msra.mxu0 0.0
    %818 = vmatprep.subr.mxu0 0.0
    %819 = vmatpush1.msra.mxu0 0.0
    %820 = vmatprep.subr.mxu0 0.0
    %821 = vmatpush1.msra.mxu0 0.0
    %822 = vmatprep.subr.mxu0 0.0
    %823 = vmatpush1.msra.mxu0 0.0
    %824 = vmatprep.subr.mxu0 0.0
    %825 = vmatpush1.msra.mxu0 0.0
    %826 = vmatprep.subr.mxu0 0.0
    %827 = vmatpush1.msra.mxu0 0.0
    %828 = vmatprep.subr.mxu0 0.0
    %829 = vmatpush1.msra.mxu0 0.0
    %830 = vmatprep.subr.mxu0 0.0
    %831 = vmatpush1.msra.mxu0 0.0
    %832 = vmatprep.subr.mxu0 0.0
    %833 = vmatpush1.msra.mxu0 0.0
    %834 = vmatprep.subr.mxu0 0.0
    %835 = vmatpush1.msra.mxu0 0.0
    %836 = vmatprep.subr.mxu0 0.0
    %837 = vmatpush1.msra.mxu0 0.0
    %838 = vmatprep.subr.mxu0 0.0
    %839 = vmatpush1.msra.mxu0 0.0
    %840 = vmatprep.subr.mxu0 0.0
    %841 = vmatpush1.msra.mxu0 0.0
    %842 = vmatprep.subr.mxu0 0.0
    %843 = vmatpush1.msra.mxu0 0.0
    %844 = vmatprep.subr.mxu0 0.0
    %845 = vmatpush1.msra.mxu0 0.0
    %846 = vmatprep.subr.mxu0 0.0
    %847 = vmatpush1.msra.mxu0 0.0
    %848 = vmatprep.subr.mxu0 0.0
    %849 = vmatpush1.msra.mxu0 0.0
    %850 = vmatprep.subr.mxu0 0.0
    %851 = vmatpush1.msra.mxu0 0.0
    %852 = vmatprep.mubr.f32.mxu0 0.0
    %853 = vmatmul.mubr.f32.gmra.mrb[0].mxu0 %v385
    %v854 = vpop.f32.mrb[0].mxu0
    %v855 = vadd.f32 %v380, %v854
    %v856 = vpop.f32.mrb[0].mxu0
    %857 = vdwg.mxu0
    %v858 = vadd.f32 %v781, %v855
    %v859 = vmax.f32 %v858, 0.0
    %s860 = scalar_lea.vmem [#allocation2], 8
    %861 = vst.msk [vmem:[%s860] sm:$0xff] %vm461, %v859
    // Predicated region
    $region30: #{tpu_custom_call.1} parent=1 // pred_check
      _
    $region31: #{tpu_custom_call.1} parent=1 // pred_check_branch
      %863 = sbr.rel (0) target = $region33
    $region32: #{tpu_custom_call.1} parent=1 // pred_region
      %s865 = ssub.s32 256, 256
      %866 = vsyncadd [#allocation3], %s865
      %s867 = sshll.u32 [#allocation2], 4
      %s868 = int_to_ptr.vmem [resolvable:$true] %s867
      %873 = dma.vmem_to_hbm [thread:$0]  %s868, 256, %s7, [#allocation3], 128, 128, 8
    $region33: #{tpu_custom_call.1} parent=1 // pred_fallthru
      _
    // Predicated region
    $region34: #{tpu_custom_call.1} parent=1 // pred_check
      _
    $region35: #{tpu_custom_call.1} parent=1 // pred_check_branch
      %875 = sbr.rel (0) target = $region37
    $region36: #{tpu_custom_call.1} parent=1 // pred_region
      %876 = dma.done [#allocation3], 256
    $region37: #{tpu_custom_call.1} parent=1 // pred_fallthru
      _
    %877 = vsyncpa [#allocation3], 1

</llo_original>
